<compile_context>
chip_gen: v7x
topology: tpu7x:2x2x1
jax: 0.10.0
libtpu: 0.0.40
codegen_flags: <defaults>
</compile_context>

<pallas_src>
import jax
import jax.numpy as jnp
from jax.experimental import pallas as pl
from jax.experimental.pallas import tpu as pltpu

ALPHA = 0.5  # fixed in the module


def _fused_mlp_kernel(
    x_ref,      # (TB, Dcat)    streamed [text | image] rows
    wcat_ref,   # (Dcat, F)     alpha-folded concatenated projection weight
    bf_ref,     # (1, F)        alpha-folded projection bias
    w1_ref,     # (F, F)        classifier[0] weight^T
    b1_ref,     # (1, F)        classifier[0] bias
    w2_ref,     # (F, Cp)       classifier[3] weight^T, zero-padded to Cp lanes
    b2_ref,     # (1, Cp)       classifier[3] bias, zero-padded
    out_ref,    # (TB, Cp)      padded logits out
):
    # fused = alpha * text_proj + (1 - alpha) * image_proj, as a single matmul.
    fused = jnp.dot(x_ref[...], wcat_ref[...],
                    preferred_element_type=jnp.float32) + bf_ref[...]
    # classifier: Linear -> ReLU -> (Dropout: identity in eval) -> Linear
    h = jnp.dot(fused, w1_ref[...],
                preferred_element_type=jnp.float32) + b1_ref[...]
    h = jnp.maximum(h, 0.0)
    out_ref[...] = (jnp.dot(h, w2_ref[...],
                            preferred_element_type=jnp.float32)
                    + b2_ref[...]).astype(out_ref.dtype)


def _round_up(x, m):
    return ((x + m - 1) // m) * m


def baseline_weighted_sum_forward(text_features, image_features, params,
                                  *, batch_tile=512):
    """Returns (logits, text_features, image_features, alpha_expanded)."""
    B, Dt = text_features.shape
    _, Di = image_features.shape
    F_dim = params["wt"].shape[1]
    C = params["w2"].shape[1]
    Dcat = Dt + Di

    # --- wrapper-side algebra / layout plumbing (all f32, done once) ---------
    # Fold alpha into the projection weights and concatenate them.
    w_cat = jnp.concatenate(
        [ALPHA * params["wt"], (1.0 - ALPHA) * params["wi"]], axis=0
    ).astype(jnp.float32)                                   # (Dcat, F)
    b_fused = (ALPHA * params["bt"]
               + (1.0 - ALPHA) * params["bi"]).astype(jnp.float32)   # (1, F)

    # Pad classifier output dim to a lane-dense width (multiple of 128).
    C_pad = max(128, _round_up(C, 128))
    w2 = jnp.zeros((F_dim, C_pad), jnp.float32).at[:, :C].set(params["w2"])
    b2 = jnp.zeros((1, C_pad), jnp.float32).at[:, :C].set(params["b2"])

    # Concatenate inputs; pick an adaptive batch tile:
    #   small batch  -> pad only to a multiple of 8 (single grid step, no waste)
    #   large batch  -> big tile (default 512) to amortize per-step overhead.
    x_cat = jnp.concatenate(
        [text_features, image_features], axis=1).astype(jnp.float32)  # (B, Dcat)
    TB = min(batch_tile, _round_up(B, 8))
    TB = max(8, _round_up(TB, 8))
    B_pad = _round_up(B, TB)
    if B_pad != B:
        x_cat = jnp.pad(x_cat, ((0, B_pad - B), (0, 0)))
    n_steps = B_pad // TB

    # Advisory cost estimate for the XLA scheduler around the custom call.
    flops = 2 * B_pad * (Dcat * F_dim + F_dim * F_dim + F_dim * C_pad)
    bytes_accessed = 4 * (B_pad * Dcat + B_pad * C_pad
                          + Dcat * F_dim + F_dim * F_dim + F_dim * C_pad
                          + 2 * F_dim + C_pad)
    cost = pl.CostEstimate(flops=flops, transcendentals=0,
                           bytes_accessed=bytes_accessed)

    # --- pallas call ----------------------------------------------------------
    # Weights stay VMEM-resident (block (0, 0) every step); activations/output
    # stream over the batch grid axis with automatic double-buffering.
    resident = lambda shape: pl.BlockSpec(shape, lambda i: (0,) * len(shape))

    logits_padded = pl.pallas_call(
        _fused_mlp_kernel,
        out_shape=jax.ShapeDtypeStruct((B_pad, C_pad), jnp.float32),
        grid=(n_steps,),
        in_specs=[
            pl.BlockSpec((TB, Dcat), lambda i: (i, 0)),     # streamed rows
            resident((Dcat, F_dim)),
            resident((1, F_dim)),
            resident((F_dim, F_dim)),
            resident((1, F_dim)),
            resident((F_dim, C_pad)),
            resident((1, C_pad)),
        ],
        out_specs=pl.BlockSpec((TB, C_pad), lambda i: (i, 0)),
        compiler_params=pltpu.CompilerParams(
            dimension_semantics=("parallel",)),
        cost_estimate=cost,
    )(x_cat, w_cat, b_fused, params["w1"], params["b1"], w2, b2)

    logits = logits_padded[:B, :C]
    alpha_expanded = jnp.full((B, 1), ALPHA, dtype=jnp.float32)
    return logits, text_features, image_features, alpha_expanded


def init_params(key, text_dim, image_dim, fusion_dim, num_classes):
    ks = jax.random.split(key, 8)
    scale = 0.02
    return {
        "wt": scale * jax.random.normal(ks[0], (text_dim, fusion_dim), jnp.float32),
        "bt": scale * jax.random.normal(ks[1], (1, fusion_dim), jnp.float32),
        "wi": scale * jax.random.normal(ks[2], (image_dim, fusion_dim), jnp.float32),
        "bi": scale * jax.random.normal(ks[3], (1, fusion_dim), jnp.float32),
        "w1": scale * jax.random.normal(ks[4], (fusion_dim, fusion_dim), jnp.float32),
        "b1": scale * jax.random.normal(ks[5], (1, fusion_dim), jnp.float32),
        "w2": scale * jax.random.normal(ks[6], (fusion_dim, num_classes), jnp.float32),
        "b2": scale * jax.random.normal(ks[7], (1, num_classes), jnp.float32),
    }


if __name__ == "__main__":
    # Small synthetic config:
    #   text_dim (BERT hidden)  -> 128
    #   image_dim (IMAGE_EMBED_DIM, ResNet pooled) -> 256
    #   FUSION_DIM -> 128, NUM_CLASSES -> 8, batch -> 8
    B, TEXT_DIM, IMAGE_DIM, FUSION_DIM, NUM_CLASSES = 8, 128, 256, 128, 8

    key = jax.random.PRNGKey(0)
    k_text, k_img, k_params = jax.random.split(key, 3)

    # Stand-ins for encoder outputs (see TODO above).
    text_features = jax.random.normal(k_text, (B, TEXT_DIM), jnp.float32)
    image_features = jax.random.normal(k_img, (B, IMAGE_DIM), jnp.float32)
    params = init_params(k_params, TEXT_DIM, IMAGE_DIM, FUSION_DIM, NUM_CLASSES)

    logits, t_out, i_out, alpha_out = baseline_weighted_sum_forward(
        text_features, image_features, params)
    jax.block_until_ready(logits)

    # Reference check in plain JAX (dropout = identity in eval mode).
    t_proj = text_features @ params["wt"] + params["bt"]
    i_proj = image_features @ params["wi"] + params["bi"]
    fused = ALPHA * t_proj + (1.0 - ALPHA) * i_proj
    h = jnp.maximum(fused @ params["w1"] + params["b1"], 0.0)
    ref_logits = h @ params["w2"] + params["b2"]
    assert jnp.allclose(logits, ref_logits, atol=1e-4, rtol=1e-4)
    assert logits.shape == (B, NUM_CLASSES)
    assert alpha_out.shape == (B, 1)

    print("KERNEL_OK")
</pallas_src>

<mosaic_0001>
module attributes {stable_mosaic.version = 11 : i64} {
  func.func @_fused_mlp_kernel(%arg0: i32, %arg1: memref<8x384xf32, #tpu.memory_space<vmem>>, %arg2: memref<384x128xf32, #tpu.memory_space<vmem>>, %arg3: memref<1x128xf32, #tpu.memory_space<vmem>>, %arg4: memref<128x128xf32, #tpu.memory_space<vmem>>, %arg5: memref<1x128xf32, #tpu.memory_space<vmem>>, %arg6: memref<128x128xf32, #tpu.memory_space<vmem>>, %arg7: memref<1x128xf32, #tpu.memory_space<vmem>>, %arg8: memref<8x128xf32, #tpu.memory_space<vmem>>) attributes {dimension_semantics = [#tpu.dimension_semantics<parallel>], iteration_bounds = array<i64: 1>, scalar_prefetch = 0 : i64, scratch_operands = 0 : i64, tpu.core_type = #tpu.core_type<tc>, window_params = [{transform_indices = @transform_0, window_bounds = array<i64: 8, 384>}, {pipeline_mode = #tpu.pipeline_mode<synchronous>, transform_indices = @transform_1, window_bounds = array<i64: 384, 128>}, {pipeline_mode = #tpu.pipeline_mode<synchronous>, transform_indices = @transform_2, window_bounds = array<i64: 1, 128>}, {pipeline_mode = #tpu.pipeline_mode<synchronous>, transform_indices = @transform_3, window_bounds = array<i64: 128, 128>}, {pipeline_mode = #tpu.pipeline_mode<synchronous>, transform_indices = @transform_4, window_bounds = array<i64: 1, 128>}, {pipeline_mode = #tpu.pipeline_mode<synchronous>, transform_indices = @transform_5, window_bounds = array<i64: 128, 128>}, {pipeline_mode = #tpu.pipeline_mode<synchronous>, transform_indices = @transform_6, window_bounds = array<i64: 1, 128>}, {transform_indices = @transform_7, window_bounds = array<i64: 8, 128>}]} {
    %c0 = arith.constant 0 : index
    %c0_0 = arith.constant 0 : index
    %0 = vector.load %arg1[%c0, %c0_0] : memref<8x384xf32, #tpu.memory_space<vmem>>, vector<8x384xf32>
    %c0_1 = arith.constant 0 : index
    %c0_2 = arith.constant 0 : index
    %1 = vector.load %arg2[%c0_1, %c0_2] : memref<384x128xf32, #tpu.memory_space<vmem>>, vector<384x128xf32>
    %cst = arith.constant dense<0.000000e+00> : vector<8x128xf32>
    %2 = tpu.matmul %0, %1, %cst {dimension_numbers = #tpu.dot_dimension_numbers<[1], [0], [0], [1], [0, 0, 1, 1], [], []>} : vector<8x384xf32>, vector<384x128xf32>, vector<8x128xf32> -> vector<8x128xf32>
    %c0_3 = arith.constant 0 : index
    %c0_4 = arith.constant 0 : index
    %3 = vector.load %arg3[%c0_3, %c0_4] : memref<1x128xf32, #tpu.memory_space<vmem>>, vector<1x128xf32>
    %4 = vector.broadcast %3 : vector<1x128xf32> to vector<8x128xf32>
    %5 = arith.addf %2, %4 : vector<8x128xf32>
    %c0_5 = arith.constant 0 : index
    %c0_6 = arith.constant 0 : index
    %6 = vector.load %arg4[%c0_5, %c0_6] : memref<128x128xf32, #tpu.memory_space<vmem>>, vector<128x128xf32>
    %cst_7 = arith.constant dense<0.000000e+00> : vector<8x128xf32>
    %7 = tpu.matmul %5, %6, %cst_7 {dimension_numbers = #tpu.dot_dimension_numbers<[1], [0], [0], [1], [0, 0, 1, 1], [], []>} : vector<8x128xf32>, vector<128x128xf32>, vector<8x128xf32> -> vector<8x128xf32>
    %c0_8 = arith.constant 0 : index
    %c0_9 = arith.constant 0 : index
    %8 = vector.load %arg5[%c0_8, %c0_9] : memref<1x128xf32, #tpu.memory_space<vmem>>, vector<1x128xf32>
    %9 = vector.broadcast %8 : vector<1x128xf32> to vector<8x128xf32>
    %10 = arith.addf %7, %9 : vector<8x128xf32>
    %cst_10 = arith.constant 0.000000e+00 : f32
    %11 = vector.broadcast %cst_10 : f32 to vector<8x128xf32>
    %12 = arith.maximumf %10, %11 : vector<8x128xf32>
    %c0_11 = arith.constant 0 : index
    %c0_12 = arith.constant 0 : index
    %13 = vector.load %arg6[%c0_11, %c0_12] : memref<128x128xf32, #tpu.memory_space<vmem>>, vector<128x128xf32>
    %cst_13 = arith.constant dense<0.000000e+00> : vector<8x128xf32>
    %14 = tpu.matmul %12, %13, %cst_13 {dimension_numbers = #tpu.dot_dimension_numbers<[1], [0], [0], [1], [0, 0, 1, 1], [], []>} : vector<8x128xf32>, vector<128x128xf32>, vector<8x128xf32> -> vector<8x128xf32>
    %c0_14 = arith.constant 0 : index
    %c0_15 = arith.constant 0 : index
    %15 = vector.load %arg7[%c0_14, %c0_15] : memref<1x128xf32, #tpu.memory_space<vmem>>, vector<1x128xf32>
    %16 = vector.broadcast %15 : vector<1x128xf32> to vector<8x128xf32>
    %17 = arith.addf %14, %16 : vector<8x128xf32>
    %c0_16 = arith.constant 0 : index
    %c0_17 = arith.constant 0 : index
    %18 = vector.load %arg8[%c0_16, %c0_17] : memref<8x128xf32, #tpu.memory_space<vmem>>, vector<8x128xf32>
    tpu.vector_store %arg8[%c0_16, %c0_17], %17 {strides = array<i32>} : memref<8x128xf32, #tpu.memory_space<vmem>>, vector<8x128xf32>,
    return
  }
  func.func @transform_0(%arg0: i32) -> (i32, i32) {
    %c0_i32 = arith.constant 0 : i32
    %c0_i32_0 = arith.constant 0 : i32
    return %arg0, %c0_i32 : i32, i32
  }
  func.func @transform_1(%arg0: i32) -> (i32, i32) {
    %c0_i32 = arith.constant 0 : i32
    %c0_i32_0 = arith.constant 0 : i32
    %c0_i32_1 = arith.constant 0 : i32
    return %c0_i32, %c0_i32_0 : i32, i32
  }
  func.func @transform_2(%arg0: i32) -> (i32, i32) {
    %c0_i32 = arith.constant 0 : i32
    %c0_i32_0 = arith.constant 0 : i32
    %c0_i32_1 = arith.constant 0 : i32
    return %c0_i32, %c0_i32_0 : i32, i32
  }
  func.func @transform_3(%arg0: i32) -> (i32, i32) {
    %c0_i32 = arith.constant 0 : i32
    %c0_i32_0 = arith.constant 0 : i32
    %c0_i32_1 = arith.constant 0 : i32
    return %c0_i32, %c0_i32_0 : i32, i32
  }
  func.func @transform_4(%arg0: i32) -> (i32, i32) {
    %c0_i32 = arith.constant 0 : i32
    %c0_i32_0 = arith.constant 0 : i32
    %c0_i32_1 = arith.constant 0 : i32
    return %c0_i32, %c0_i32_0 : i32, i32
  }
  func.func @transform_5(%arg0: i32) -> (i32, i32) {
    %c0_i32 = arith.constant 0 : i32
    %c0_i32_0 = arith.constant 0 : i32
    %c0_i32_1 = arith.constant 0 : i32
    return %c0_i32, %c0_i32_0 : i32, i32
  }
  func.func @transform_6(%arg0: i32) -> (i32, i32) {
    %c0_i32 = arith.constant 0 : i32
    %c0_i32_0 = arith.constant 0 : i32
    %c0_i32_1 = arith.constant 0 : i32
    return %c0_i32, %c0_i32_0 : i32, i32
  }
  func.func @transform_7(%arg0: i32) -> (i32, i32) {
    %c0_i32 = arith.constant 0 : i32
    %c0_i32_0 = arith.constant 0 : i32
    return %arg0, %c0_i32 : i32, i32
  }
}

</mosaic_0001>

<llo_original>
// kernel: tpu_custom_call.1
$region0: #{tpu_custom_call.1}
  #allocation0 [shape = 'u32[]', space=smem, size = 0x4, offset = 0x4, fixed_abs, tag = 'smem constant byte address 0x4 - core index']
  #allocation1 [shape = 'u32[144,128]{1,0:T(1,128)}', space=vmem, size = 0x12000, scoped, tag = 'internal scratch']
  %s0 = inlined_call_operand.hbm [shape: f32[8,384], index: 0, kind: input, shape index: {}]
  %s1 = inlined_call_operand.hbm [shape: f32[384,128], index: 1, kind: input, shape index: {}]
  %s2 = inlined_call_operand.vmem [shape: f32[1,128], index: 2, kind: input, shape index: {}]
  %s3 = inlined_call_operand.hbm [shape: f32[128,128], index: 3, kind: input, shape index: {}]
  %s4 = inlined_call_operand.vmem [shape: f32[1,128], index: 4, kind: input, shape index: {}]
  %s5 = inlined_call_operand.hbm [shape: f32[128,128], index: 5, kind: input, shape index: {}]
  %s6 = inlined_call_operand.vmem [shape: f32[1,128], index: 6, kind: input, shape index: {}]
  %s7 = inlined_call_operand.hbm [shape: f32[8,128], index: 7, kind: output, shape index: {}]
  %s8 = sld [smem:[#allocation0]]
  $region54: #{tpu_custom_call.1} parent=0
    _
  %s10 = ssub.s32 1, %s8
  %s11 = scalar_select 0, %s10, %s8
  $region1: #{tpu_custom_call.1} parent=0
    #allocation2 [shape = 'u8[12288]{0}', space=vmem, size = 0x3000, scoped, tag = 'input window, operand 0, single buffered']
    #allocation3 [shape = 's32[1]{0}', space=sflag, size = 0x4, scoped, tag = 'scoped memory for tpu_custom_call.1']
    #allocation4 [shape = 's32[1]{0}', space=sflag, size = 0x4, scoped, tag = 'scoped memory for tpu_custom_call.1']
    #allocation5 [shape = 'u8[196608]{0}', space=vmem, size = 0x30000, scoped, tag = 'input window, operand 1, single buffered']
    #allocation6 [shape = 's32[1]{0}', space=sflag, size = 0x4, scoped, tag = 'scoped memory for tpu_custom_call.1']
    #allocation7 [shape = 'u8[65536]{0}', space=vmem, size = 0x10000, scoped, tag = 'input window, operand 3, single buffered']
    #allocation8 [shape = 'u8[65536]{0}', space=vmem, size = 0x10000, scoped, tag = 'input window, operand 5, single buffered']
    #allocation9 [shape = 's32[1]{0}', space=sflag, size = 0x4, scoped, tag = 'scoped memory for tpu_custom_call.1']
    #allocation10 [shape = 'u8[4096]{0}', space=vmem, size = 0x1000, scoped, tag = 'output window, operand 0, single buffered']
    %12 = vsyncpa [#allocation3], 0
    %13 = vsyncpa [#allocation6], 0
    %14 = vsyncpa [#allocation9], 0
    %15 = vsyncpa [#allocation4], 0
    // Predicated region
    $region2: #{tpu_custom_call.1} parent=1 // pred_check
      _
    $region3: #{tpu_custom_call.1} parent=1 // pred_check_branch
      %17 = sbr.rel (0) target = $region5
    $region4: #{tpu_custom_call.1} parent=1 // pred_region
      %s19 = ssub.s32 384, 384
      %20 = vsyncadd [#allocation3], %s19
      %s22 = sshll.u32 [#allocation2], 4
      %s23 = int_to_ptr.vmem [resolvable:$true] %s22
      %25 = dma.hbm_to_vmem [thread:$0]  %s0, 384, %s23, [#allocation3]
    $region5: #{tpu_custom_call.1} parent=1 // pred_fallthru
      _
    // Predicated region
    $region6: #{tpu_custom_call.1} parent=1 // pred_check
      _
    $region7: #{tpu_custom_call.1} parent=1 // pred_check_branch
      %27 = sbr.rel (0) target = $region9
    $region8: #{tpu_custom_call.1} parent=1 // pred_region
      %s29 = ssub.s32 6144, 6144
      %30 = vsyncadd [#allocation6], %s29
      %s31 = sshll.u32 [#allocation5], 4
      %s32 = int_to_ptr.vmem [resolvable:$true] %s31
      %37 = dma.hbm_to_vmem [thread:$0]  %s1, 6144, %s32, [#allocation6], 128, 128, 8
    $region9: #{tpu_custom_call.1} parent=1 // pred_fallthru
      _
    // Predicated region
    $region10: #{tpu_custom_call.1} parent=1 // pred_check
      _
    $region11: #{tpu_custom_call.1} parent=1 // pred_check_branch
      %39 = sbr.rel (0) target = $region13
    $region12: #{tpu_custom_call.1} parent=1 // pred_region
      _
    $region13: #{tpu_custom_call.1} parent=1 // pred_fallthru
      _
    // Predicated region
    $region14: #{tpu_custom_call.1} parent=1 // pred_check
      _
    $region15: #{tpu_custom_call.1} parent=1 // pred_check_branch
      %41 = sbr.rel (0) target = $region17
    $region16: #{tpu_custom_call.1} parent=1 // pred_region
      %s43 = ssub.s32 2048, 2048
      %44 = vsyncadd [#allocation6], %s43
      %s45 = sshll.u32 [#allocation7], 4
      %s46 = int_to_ptr.vmem [resolvable:$true] %s45
      %51 = dma.hbm_to_vmem [thread:$0]  %s3, 2048, %s46, [#allocation6], 128, 128, 8
    $region17: #{tpu_custom_call.1} parent=1 // pred_fallthru
      _
    // Predicated region
    $region18: #{tpu_custom_call.1} parent=1 // pred_check
      _
    $region19: #{tpu_custom_call.1} parent=1 // pred_check_branch
      %53 = sbr.rel (0) target = $region21
    $region20: #{tpu_custom_call.1} parent=1 // pred_region
      _
    $region21: #{tpu_custom_call.1} parent=1 // pred_fallthru
      _
    // Predicated region
    $region22: #{tpu_custom_call.1} parent=1 // pred_check
      _
    $region23: #{tpu_custom_call.1} parent=1 // pred_check_branch
      %55 = sbr.rel (0) target = $region25
    $region24: #{tpu_custom_call.1} parent=1 // pred_region
      %s57 = ssub.s32 2048, 2048
      %58 = vsyncadd [#allocation9], %s57
      %s59 = sshll.u32 [#allocation8], 4
      %s60 = int_to_ptr.vmem [resolvable:$true] %s59
      %65 = dma.hbm_to_vmem [thread:$0]  %s5, 2048, %s60, [#allocation9], 128, 128, 8
    $region25: #{tpu_custom_call.1} parent=1 // pred_fallthru
      _
    // Predicated region
    $region26: #{tpu_custom_call.1} parent=1 // pred_check
      _
    $region27: #{tpu_custom_call.1} parent=1 // pred_check_branch
      %67 = sbr.rel (0) target = $region29
    $region28: #{tpu_custom_call.1} parent=1 // pred_region
      _
    $region29: #{tpu_custom_call.1} parent=1 // pred_fallthru
      _
    // Predicated region
    $region30: #{tpu_custom_call.1} parent=1 // pred_check
      _
    $region31: #{tpu_custom_call.1} parent=1 // pred_check_branch
      %69 = sbr.rel (0) target = $region33
    $region32: #{tpu_custom_call.1} parent=1 // pred_region
      %70 = dma.done [#allocation3], 384
    $region33: #{tpu_custom_call.1} parent=1 // pred_fallthru
      _
    // Predicated region
    $region34: #{tpu_custom_call.1} parent=1 // pred_check
      _
    $region35: #{tpu_custom_call.1} parent=1 // pred_check_branch
      %72 = sbr.rel (0) target = $region37
    $region36: #{tpu_custom_call.1} parent=1 // pred_region
      %73 = dma.done [#allocation6], 6144
    $region37: #{tpu_custom_call.1} parent=1 // pred_fallthru
      _
    // Predicated region
    $region38: #{tpu_custom_call.1} parent=1 // pred_check
      _
    $region39: #{tpu_custom_call.1} parent=1 // pred_check_branch
      %75 = sbr.rel (0) target = $region41
    $region40: #{tpu_custom_call.1} parent=1 // pred_region
      %76 = dma.done [#allocation6], 2048
    $region41: #{tpu_custom_call.1} parent=1 // pred_fallthru
      _
    // Predicated region
    $region42: #{tpu_custom_call.1} parent=1 // pred_check
      _
    $region43: #{tpu_custom_call.1} parent=1 // pred_check_branch
      %78 = sbr.rel (0) target = $region45
    $region44: #{tpu_custom_call.1} parent=1 // pred_region
      %79 = dma.done [#allocation9], 2048
    $region45: #{tpu_custom_call.1} parent=1 // pred_fallthru
      _
    %v80 = vld [vmem:[#allocation2] sm:$0xff]
    %v81 = vld [vmem:[#allocation2 + $0x8] sm:$0xff]
    %v82 = vld [vmem:[#allocation2 + $0x10] sm:$0xff]
    %v83 = vld [vmem:[#allocation5] sm:$0xff]
    %v84 = vld [vmem:[#allocation5 + $0x8] sm:$0xff]
    %v85 = vld [vmem:[#allocation5 + $0x10] sm:$0xff]
    %v86 = vld [vmem:[#allocation5 + $0x18] sm:$0xff]
    %v87 = vld [vmem:[#allocation5 + $0x20] sm:$0xff]
    %v88 = vld [vmem:[#allocation5 + $0x28] sm:$0xff]
    %v89 = vld [vmem:[#allocation5 + $0x30] sm:$0xff]
    %v90 = vld [vmem:[#allocation5 + $0x38] sm:$0xff]
    %v91 = vld [vmem:[#allocation5 + $0x40] sm:$0xff]
    %v92 = vld [vmem:[#allocation5 + $0x48] sm:$0xff]
    %v93 = vld [vmem:[#allocation5 + $0x50] sm:$0xff]
    %v94 = vld [vmem:[#allocation5 + $0x58] sm:$0xff]
    %v95 = vld [vmem:[#allocation5 + $0x60] sm:$0xff]
    %v96 = vld [vmem:[#allocation5 + $0x68] sm:$0xff]
    %v97 = vld [vmem:[#allocation5 + $0x70] sm:$0xff]
    %v98 = vld [vmem:[#allocation5 + $0x78] sm:$0xff]
    %v99 = vld [vmem:[#allocation5 + $0x80] sm:$0xff]
    %v100 = vld [vmem:[#allocation5 + $0x88] sm:$0xff]
    %v101 = vld [vmem:[#allocation5 + $0x90] sm:$0xff]
    %v102 = vld [vmem:[#allocation5 + $0x98] sm:$0xff]
    %v103 = vld [vmem:[#allocation5 + $0xa0] sm:$0xff]
    %v104 = vld [vmem:[#allocation5 + $0xa8] sm:$0xff]
    %v105 = vld [vmem:[#allocation5 + $0xb0] sm:$0xff]
    %v106 = vld [vmem:[#allocation5 + $0xb8] sm:$0xff]
    %v107 = vld [vmem:[#allocation5 + $0xc0] sm:$0xff]
    %v108 = vld [vmem:[#allocation5 + $0xc8] sm:$0xff]
    %v109 = vld [vmem:[#allocation5 + $0xd0] sm:$0xff]
    %v110 = vld [vmem:[#allocation5 + $0xd8] sm:$0xff]
    %v111 = vld [vmem:[#allocation5 + $0xe0] sm:$0xff]
    %v112 = vld [vmem:[#allocation5 + $0xe8] sm:$0xff]
    %v113 = vld [vmem:[#allocation5 + $0xf0] sm:$0xff]
    %v114 = vld [vmem:[#allocation5 + $0xf8] sm:$0xff]
    %v115 = vld [vmem:[#allocation5 + $0x100] sm:$0xff]
    %v116 = vld [vmem:[#allocation5 + $0x108] sm:$0xff]
    %v117 = vld [vmem:[#allocation5 + $0x110] sm:$0xff]
    %v118 = vld [vmem:[#allocation5 + $0x118] sm:$0xff]
    %v119 = vld [vmem:[#allocation5 + $0x120] sm:$0xff]
    %v120 = vld [vmem:[#allocation5 + $0x128] sm:$0xff]
    %v121 = vld [vmem:[#allocation5 + $0x130] sm:$0xff]
    %v122 = vld [vmem:[#allocation5 + $0x138] sm:$0xff]
    %v123 = vld [vmem:[#allocation5 + $0x140] sm:$0xff]
    %v124 = vld [vmem:[#allocation5 + $0x148] sm:$0xff]
    %v125 = vld [vmem:[#allocation5 + $0x150] sm:$0xff]
    %v126 = vld [vmem:[#allocation5 + $0x158] sm:$0xff]
    %v127 = vld [vmem:[#allocation5 + $0x160] sm:$0xff]
    %v128 = vld [vmem:[#allocation5 + $0x168] sm:$0xff]
    %v129 = vld [vmem:[#allocation5 + $0x170] sm:$0xff]
    %v130 = vld [vmem:[#allocation5 + $0x178] sm:$0xff]
    %v131 = vld [vmem:[%s2] sm:$0x1]
    %v133 = vlaneseq
    %v134 = vshrl.u32 %v133, 7
    %v135 = vsub.s32 0, %v134
    %v136 = vrot.slane %v131, %v135
    %138 = vmatprep.subr.mxu0 0.0
    %139 = vmatpush1.msra.mxu0 %v83
    %140 = vmatprep.subr.mxu0 0.0
    %141 = vmatpush1.msra.mxu0 %v84
    %142 = vmatprep.subr.mxu0 0.0
    %143 = vmatpush1.msra.mxu0 %v85
    %144 = vmatprep.subr.mxu0 0.0
    %145 = vmatpush1.msra.mxu0 %v86
    %146 = vmatprep.subr.mxu0 0.0
    %147 = vmatpush1.msra.mxu0 %v87
    %148 = vmatprep.subr.mxu0 0.0
    %149 = vmatpush1.msra.mxu0 %v88
    %150 = vmatprep.subr.mxu0 0.0
    %151 = vmatpush1.msra.mxu0 %v89
    %152 = vmatprep.subr.mxu0 0.0
    %153 = vmatpush1.msra.mxu0 %v90
    %154 = vmatprep.subr.mxu0 0.0
    %155 = vmatpush1.msra.mxu0 %v91
    %156 = vmatprep.subr.mxu0 0.0
    %157 = vmatpush1.msra.mxu0 %v92
    %158 = vmatprep.subr.mxu0 0.0
    %159 = vmatpush1.msra.mxu0 %v93
    %160 = vmatprep.subr.mxu0 0.0
    %161 = vmatpush1.msra.mxu0 %v94
    %162 = vmatprep.subr.mxu0 0.0
    %163 = vmatpush1.msra.mxu0 %v95
    %164 = vmatprep.subr.mxu0 0.0
    %165 = vmatpush1.msra.mxu0 %v96
    %166 = vmatprep.subr.mxu0 0.0
    %167 = vmatpush1.msra.mxu0 %v97
    %168 = vmatprep.subr.mxu0 0.0
    %169 = vmatpush1.msra.mxu0 %v98
    %170 = vmatprep.subr.mxu0 0.0
    %171 = vmatpush1.msra.mxu0 %v99
    %172 = vmatprep.subr.mxu0 0.0
    %173 = vmatpush1.msra.mxu0 %v100
    %174 = vmatprep.subr.mxu0 0.0
    %175 = vmatpush1.msra.mxu0 %v101
    %176 = vmatprep.subr.mxu0 0.0
    %177 = vmatpush1.msra.mxu0 %v102
    %178 = vmatprep.subr.mxu0 0.0
    %179 = vmatpush1.msra.mxu0 %v103
    %180 = vmatprep.subr.mxu0 0.0
    %181 = vmatpush1.msra.mxu0 %v104
    %182 = vmatprep.subr.mxu0 0.0
    %183 = vmatpush1.msra.mxu0 %v105
    %184 = vmatprep.subr.mxu0 0.0
    %185 = vmatpush1.msra.mxu0 %v106
    %186 = vmatprep.subr.mxu0 0.0
    %187 = vmatpush1.msra.mxu0 %v107
    %188 = vmatprep.subr.mxu0 0.0
    %189 = vmatpush1.msra.mxu0 %v108
    %190 = vmatprep.subr.mxu0 0.0
    %191 = vmatpush1.msra.mxu0 %v109
    %192 = vmatprep.subr.mxu0 0.0
    %193 = vmatpush1.msra.mxu0 %v110
    %194 = vmatprep.subr.mxu0 0.0
    %195 = vmatpush1.msra.mxu0 %v111
    %196 = vmatprep.subr.mxu0 0.0
    %197 = vmatpush1.msra.mxu0 %v112
    %198 = vmatprep.subr.mxu0 0.0
    %199 = vmatpush1.msra.mxu0 %v113
    %200 = vmatprep.subr.mxu0 0.0
    %201 = vmatpush1.msra.mxu0 %v114
    %202 = vmatprep.mubr.f32.mxu0 %v81
    %203 = vmatmul.mubr.f32.gmra.mrb[0].mxu0 %v80
    %v204 = vpop.f32.mrb[0].mxu0
    %v205 = vadd.f32 %v136, %v204
    %v206 = vpop.f32.mrb[0].mxu0
    %207 = vdwg.mxu0
    %208 = vmatprep.subr.mxu0 0.0
    %209 = vmatpush1.msra.mxu0 %v115
    %210 = vmatprep.subr.mxu0 0.0
    %211 = vmatpush1.msra.mxu0 %v116
    %212 = vmatprep.subr.mxu0 0.0
    %213 = vmatpush1.msra.mxu0 %v117
    %214 = vmatprep.subr.mxu0 0.0
    %215 = vmatpush1.msra.mxu0 %v118
    %216 = vmatprep.subr.mxu0 0.0
    %217 = vmatpush1.msra.mxu0 %v119
    %218 = vmatprep.subr.mxu0 0.0
    %219 = vmatpush1.msra.mxu0 %v120
    %220 = vmatprep.subr.mxu0 0.0
    %221 = vmatpush1.msra.mxu0 %v121
    %222 = vmatprep.subr.mxu0 0.0
    %223 = vmatpush1.msra.mxu0 %v122
    %224 = vmatprep.subr.mxu0 0.0
    %225 = vmatpush1.msra.mxu0 %v123
    %226 = vmatprep.subr.mxu0 0.0
    %227 = vmatpush1.msra.mxu0 %v124
    %228 = vmatprep.subr.mxu0 0.0
    %229 = vmatpush1.msra.mxu0 %v125
    %230 = vmatprep.subr.mxu0 0.0
    %231 = vmatpush1.msra.mxu0 %v126
    %232 = vmatprep.subr.mxu0 0.0
    %233 = vmatpush1.msra.mxu0 %v127
    %234 = vmatprep.subr.mxu0 0.0
    %235 = vmatpush1.msra.mxu0 %v128
    %236 = vmatprep.subr.mxu0 0.0
    %237 = vmatpush1.msra.mxu0 %v129
    %238 = vmatprep.subr.mxu0 0.0
    %239 = vmatpush1.msra.mxu0 %v130
    %240 = vmatprep.subr.mxu0 0.0
    %241 = vmatpush1.msra.mxu0 0.0
    %242 = vmatprep.subr.mxu0 0.0
    %243 = vmatpush1.msra.mxu0 0.0
    %244 = vmatprep.subr.mxu0 0.0
    %245 = vmatpush1.msra.mxu0 0.0
    %246 = vmatprep.subr.mxu0 0.0
    %247 = vmatpush1.msra.mxu0 0.0
    %248 = vmatprep.subr.mxu0 0.0
    %249 = vmatpush1.msra.mxu0 0.0
    %250 = vmatprep.subr.mxu0 0.0
    %251 = vmatpush1.msra.mxu0 0.0
    %252 = vmatprep.subr.mxu0 0.0
    %253 = vmatpush1.msra.mxu0 0.0
    %254 = vmatprep.subr.mxu0 0.0
    %255 = vmatpush1.msra.mxu0 0.0
    %256 = vmatprep.subr.mxu0 0.0
    %257 = vmatpush1.msra.mxu0 0.0
    %258 = vmatprep.subr.mxu0 0.0
    %259 = vmatpush1.msra.mxu0 0.0
    %260 = vmatprep.subr.mxu0 0.0
    %261 = vmatpush1.msra.mxu0 0.0
    %262 = vmatprep.subr.mxu0 0.0
    %263 = vmatpush1.msra.mxu0 0.0
    %264 = vmatprep.subr.mxu0 0.0
    %265 = vmatpush1.msra.mxu0 0.0
    %266 = vmatprep.subr.mxu0 0.0
    %267 = vmatpush1.msra.mxu0 0.0
    %268 = vmatprep.subr.mxu0 0.0
    %269 = vmatpush1.msra.mxu0 0.0
    %270 = vmatprep.subr.mxu0 0.0
    %271 = vmatpush1.msra.mxu0 0.0
    %272 = vmatprep.mubr.f32.mxu0 0.0
    %273 = vmatmul.mubr.f32.gmra.mrb[0].mxu0 %v82
    %v274 = vpop.f32.mrb[0].mxu0
    %v275 = vadd.f32 %v205, %v274
    %v276 = vpop.f32.mrb[0].mxu0
    %277 = vdwg.mxu0
    %v278 = vld [vmem:[#allocation7] sm:$0xff]
    %v279 = vld [vmem:[#allocation7 + $0x8] sm:$0xff]
    %v280 = vld [vmem:[#allocation7 + $0x10] sm:$0xff]
    %v281 = vld [vmem:[#allocation7 + $0x18] sm:$0xff]
    %v282 = vld [vmem:[#allocation7 + $0x20] sm:$0xff]
    %v283 = vld [vmem:[#allocation7 + $0x28] sm:$0xff]
    %v284 = vld [vmem:[#allocation7 + $0x30] sm:$0xff]
    %v285 = vld [vmem:[#allocation7 + $0x38] sm:$0xff]
    %v286 = vld [vmem:[#allocation7 + $0x40] sm:$0xff]
    %v287 = vld [vmem:[#allocation7 + $0x48] sm:$0xff]
    %v288 = vld [vmem:[#allocation7 + $0x50] sm:$0xff]
    %v289 = vld [vmem:[#allocation7 + $0x58] sm:$0xff]
    %v290 = vld [vmem:[#allocation7 + $0x60] sm:$0xff]
    %v291 = vld [vmem:[#allocation7 + $0x68] sm:$0xff]
    %v292 = vld [vmem:[#allocation7 + $0x70] sm:$0xff]
    %v293 = vld [vmem:[#allocation7 + $0x78] sm:$0xff]
    %v294 = vld [vmem:[%s4] sm:$0x1]
    %v296 = vlaneseq
    %v297 = vshrl.u32 %v296, 7
    %v298 = vsub.s32 0, %v297
    %v299 = vrot.slane %v294, %v298
    %301 = vmatprep.subr.mxu0 0.0
    %302 = vmatpush1.msra.mxu0 %v278
    %303 = vmatprep.subr.mxu0 0.0
    %304 = vmatpush1.msra.mxu0 %v279
    %305 = vmatprep.subr.mxu0 0.0
    %306 = vmatpush1.msra.mxu0 %v280
    %307 = vmatprep.subr.mxu0 0.0
    %308 = vmatpush1.msra.mxu0 %v281
    %309 = vmatprep.subr.mxu0 0.0
    %310 = vmatpush1.msra.mxu0 %v282
    %311 = vmatprep.subr.mxu0 0.0
    %312 = vmatpush1.msra.mxu0 %v283
    %313 = vmatprep.subr.mxu0 0.0
    %314 = vmatpush1.msra.mxu0 %v284
    %315 = vmatprep.subr.mxu0 0.0
    %316 = vmatpush1.msra.mxu0 %v285
    %317 = vmatprep.subr.mxu0 0.0
    %318 = vmatpush1.msra.mxu0 %v286
    %319 = vmatprep.subr.mxu0 0.0
    %320 = vmatpush1.msra.mxu0 %v287
    %321 = vmatprep.subr.mxu0 0.0
    %322 = vmatpush1.msra.mxu0 %v288
    %323 = vmatprep.subr.mxu0 0.0
    %324 = vmatpush1.msra.mxu0 %v289
    %325 = vmatprep.subr.mxu0 0.0
    %326 = vmatpush1.msra.mxu0 %v290
    %327 = vmatprep.subr.mxu0 0.0
    %328 = vmatpush1.msra.mxu0 %v291
    %329 = vmatprep.subr.mxu0 0.0
    %330 = vmatpush1.msra.mxu0 %v292
    %331 = vmatprep.subr.mxu0 0.0
    %332 = vmatpush1.msra.mxu0 %v293
    %333 = vmatprep.subr.mxu0 0.0
    %334 = vmatpush1.msra.mxu0 0.0
    %335 = vmatprep.subr.mxu0 0.0
    %336 = vmatpush1.msra.mxu0 0.0
    %337 = vmatprep.subr.mxu0 0.0
    %338 = vmatpush1.msra.mxu0 0.0
    %339 = vmatprep.subr.mxu0 0.0
    %340 = vmatpush1.msra.mxu0 0.0
    %341 = vmatprep.subr.mxu0 0.0
    %342 = vmatpush1.msra.mxu0 0.0
    %343 = vmatprep.subr.mxu0 0.0
    %344 = vmatpush1.msra.mxu0 0.0
    %345 = vmatprep.subr.mxu0 0.0
    %346 = vmatpush1.msra.mxu0 0.0
    %347 = vmatprep.subr.mxu0 0.0
    %348 = vmatpush1.msra.mxu0 0.0
    %349 = vmatprep.subr.mxu0 0.0
    %350 = vmatpush1.msra.mxu0 0.0
    %351 = vmatprep.subr.mxu0 0.0
    %352 = vmatpush1.msra.mxu0 0.0
    %353 = vmatprep.subr.mxu0 0.0
    %354 = vmatpush1.msra.mxu0 0.0
    %355 = vmatprep.subr.mxu0 0.0
    %356 = vmatpush1.msra.mxu0 0.0
    %357 = vmatprep.subr.mxu0 0.0
    %358 = vmatpush1.msra.mxu0 0.0
    %359 = vmatprep.subr.mxu0 0.0
    %360 = vmatpush1.msra.mxu0 0.0
    %361 = vmatprep.subr.mxu0 0.0
    %362 = vmatpush1.msra.mxu0 0.0
    %363 = vmatprep.subr.mxu0 0.0
    %364 = vmatpush1.msra.mxu0 0.0
    %365 = vmatprep.mubr.f32.mxu0 0.0
    %366 = vmatmul.mubr.f32.gmra.mrb[0].mxu0 %v275
    %v367 = vpop.f32.mrb[0].mxu0
    %v368 = vadd.f32 %v299, %v367
    %v369 = vpop.f32.mrb[0].mxu0
    %370 = vdwg.mxu0
    %v371 = vmax.f32 %v368, 0.0
    %v372 = vld [vmem:[#allocation8] sm:$0xff]
    %v373 = vld [vmem:[#allocation8 + $0x8] sm:$0xff]
    %v374 = vld [vmem:[#allocation8 + $0x10] sm:$0xff]
    %v375 = vld [vmem:[#allocation8 + $0x18] sm:$0xff]
    %v376 = vld [vmem:[#allocation8 + $0x20] sm:$0xff]
    %v377 = vld [vmem:[#allocation8 + $0x28] sm:$0xff]
    %v378 = vld [vmem:[#allocation8 + $0x30] sm:$0xff]
    %v379 = vld [vmem:[#allocation8 + $0x38] sm:$0xff]
    %v380 = vld [vmem:[#allocation8 + $0x40] sm:$0xff]
    %v381 = vld [vmem:[#allocation8 + $0x48] sm:$0xff]
    %v382 = vld [vmem:[#allocation8 + $0x50] sm:$0xff]
    %v383 = vld [vmem:[#allocation8 + $0x58] sm:$0xff]
    %v384 = vld [vmem:[#allocation8 + $0x60] sm:$0xff]
    %v385 = vld [vmem:[#allocation8 + $0x68] sm:$0xff]
    %v386 = vld [vmem:[#allocation8 + $0x70] sm:$0xff]
    %v387 = vld [vmem:[#allocation8 + $0x78] sm:$0xff]
    %v388 = vld [vmem:[%s6] sm:$0x1]
    %v390 = vlaneseq
    %v391 = vshrl.u32 %v390, 7
    %v392 = vsub.s32 0, %v391
    %v393 = vrot.slane %v388, %v392
    %395 = vmatprep.subr.mxu0 0.0
    %396 = vmatpush1.msra.mxu0 %v372
    %397 = vmatprep.subr.mxu0 0.0
    %398 = vmatpush1.msra.mxu0 %v373
    %399 = vmatprep.subr.mxu0 0.0
    %400 = vmatpush1.msra.mxu0 %v374
    %401 = vmatprep.subr.mxu0 0.0
    %402 = vmatpush1.msra.mxu0 %v375
    %403 = vmatprep.subr.mxu0 0.0
    %404 = vmatpush1.msra.mxu0 %v376
    %405 = vmatprep.subr.mxu0 0.0
    %406 = vmatpush1.msra.mxu0 %v377
    %407 = vmatprep.subr.mxu0 0.0
    %408 = vmatpush1.msra.mxu0 %v378
    %409 = vmatprep.subr.mxu0 0.0
    %410 = vmatpush1.msra.mxu0 %v379
    %411 = vmatprep.subr.mxu0 0.0
    %412 = vmatpush1.msra.mxu0 %v380
    %413 = vmatprep.subr.mxu0 0.0
    %414 = vmatpush1.msra.mxu0 %v381
    %415 = vmatprep.subr.mxu0 0.0
    %416 = vmatpush1.msra.mxu0 %v382
    %417 = vmatprep.subr.mxu0 0.0
    %418 = vmatpush1.msra.mxu0 %v383
    %419 = vmatprep.subr.mxu0 0.0
    %420 = vmatpush1.msra.mxu0 %v384
    %421 = vmatprep.subr.mxu0 0.0
    %422 = vmatpush1.msra.mxu0 %v385
    %423 = vmatprep.subr.mxu0 0.0
    %424 = vmatpush1.msra.mxu0 %v386
    %425 = vmatprep.subr.mxu0 0.0
    %426 = vmatpush1.msra.mxu0 %v387
    %427 = vmatprep.subr.mxu0 0.0
    %428 = vmatpush1.msra.mxu0 0.0
    %429 = vmatprep.subr.mxu0 0.0
    %430 = vmatpush1.msra.mxu0 0.0
    %431 = vmatprep.subr.mxu0 0.0
    %432 = vmatpush1.msra.mxu0 0.0
    %433 = vmatprep.subr.mxu0 0.0
    %434 = vmatpush1.msra.mxu0 0.0
    %435 = vmatprep.subr.mxu0 0.0
    %436 = vmatpush1.msra.mxu0 0.0
    %437 = vmatprep.subr.mxu0 0.0
    %438 = vmatpush1.msra.mxu0 0.0
    %439 = vmatprep.subr.mxu0 0.0
    %440 = vmatpush1.msra.mxu0 0.0
    %441 = vmatprep.subr.mxu0 0.0
    %442 = vmatpush1.msra.mxu0 0.0
    %443 = vmatprep.subr.mxu0 0.0
    %444 = vmatpush1.msra.mxu0 0.0
    %445 = vmatprep.subr.mxu0 0.0
    %446 = vmatpush1.msra.mxu0 0.0
    %447 = vmatprep.subr.mxu0 0.0
    %448 = vmatpush1.msra.mxu0 0.0
    %449 = vmatprep.subr.mxu0 0.0
    %450 = vmatpush1.msra.mxu0 0.0
    %451 = vmatprep.subr.mxu0 0.0
    %452 = vmatpush1.msra.mxu0 0.0
    %453 = vmatprep.subr.mxu0 0.0
    %454 = vmatpush1.msra.mxu0 0.0
    %455 = vmatprep.subr.mxu0 0.0
    %456 = vmatpush1.msra.mxu0 0.0
    %457 = vmatprep.subr.mxu0 0.0
    %458 = vmatpush1.msra.mxu0 0.0
    %459 = vmatprep.mubr.f32.mxu0 0.0
    %460 = vmatmul.mubr.f32.gmra.mrb[0].mxu0 %v371
    %v461 = vpop.f32.mrb[0].mxu0
    %v462 = vadd.f32 %v393, %v461
    %v463 = vpop.f32.mrb[0].mxu0
    %464 = vdwg.mxu0
    %465 = vst [vmem:[#allocation10] sm:$0xff] %v462
    // Predicated region
    $region46: #{tpu_custom_call.1} parent=1 // pred_check
      _
    $region47: #{tpu_custom_call.1} parent=1 // pred_check_branch
      %467 = sbr.rel (0) target = $region49
    $region48: #{tpu_custom_call.1} parent=1 // pred_region
      %s469 = ssub.s32 128, 128
      %470 = vsyncadd [#allocation4], %s469
      %s472 = sshll.u32 [#allocation10], 4
      %s473 = int_to_ptr.vmem [resolvable:$true] %s472
      %475 = dma.vmem_to_hbm [thread:$0]  %s473, 128, %s7, [#allocation4]
    $region49: #{tpu_custom_call.1} parent=1 // pred_fallthru
      _
    // Predicated region
    $region50: #{tpu_custom_call.1} parent=1 // pred_check
      _
    $region51: #{tpu_custom_call.1} parent=1 // pred_check_branch
      %477 = sbr.rel (0) target = $region53
    $region52: #{tpu_custom_call.1} parent=1 // pred_region
      %478 = dma.done [#allocation4], 128
    $region53: #{tpu_custom_call.1} parent=1 // pred_fallthru
      _
    %479 = vsyncpa [#allocation3], 1
    %480 = vsyncpa [#allocation6], 1
    %481 = vsyncpa [#allocation9], 1
    %482 = vsyncpa [#allocation4], 1

</llo_original>
